<compile_context>
chip_gen: v7x
topology: tpu7x:2x2x1
jax: 0.10.0
libtpu: 0.0.40
codegen_flags: <defaults>
</compile_context>

<pallas_src>
import functools

import jax
import jax.numpy as jnp
from jax.experimental import pallas as pl
from jax.experimental.pallas import tpu as pltpu


def _round_up(n, m):
    return ((n + m - 1) // m) * m


def _pick_tile(n_pad, candidates):
    for c in candidates:
        if n_pad % c == 0:
            return min(c, n_pad)
    return n_pad


def _gin_kernel(*refs, fuse_w1):
    if fuse_w1:
        adj_ref, feat_ref, w1_ref, b1_ref, w2_ref, b2_ref, o_ref, acc_ref = refs
    else:
        adj_ref, feat_ref, b1_ref, w2_ref, b2_ref, o_ref, acc_ref = refs
        w1_ref = None

    k = pl.program_id(1)

    @pl.when(k == 0)
    def _init():
        acc_ref[...] = jnp.zeros_like(acc_ref)

    # Sum aggregation over source-node tiles (MXU); (1+eps)*x is already folded
    # into the adjacency diagonal.  f32 accumulation regardless of operand dtype.
    acc_ref[...] += jnp.dot(adj_ref[...], feat_ref[...],
                            preferred_element_type=jnp.float32)

    @pl.when(k == pl.num_programs(1) - 1)
    def _finalize():
        acc = acc_ref[...]
        if fuse_w1:
            h1 = jnp.dot(acc, w1_ref[...],
                         preferred_element_type=jnp.float32) + b1_ref[...]
        else:
            # x @ W1 was folded into the aggregated features (reassociation).
            h1 = acc + b1_ref[...]
        h1 = jnp.maximum(h1, 0.0)
        o_ref[...] = (jnp.dot(h1, w2_ref[...],
                              preferred_element_type=jnp.float32)
                      + b2_ref[...]).astype(o_ref.dtype)


def gin_layer(x, edge_index, params, eps=0.0, *, agg_dtype=jnp.float32):
    """GINConv(Sequential(Linear(in,out), ReLU, Linear(out,out))) forward.

    x: (N, in_dim) f32; edge_index: (2, E) int32 with rows (src, dst).
    agg_dtype: operand dtype of the N^2 aggregation matmul (jnp.bfloat16 for
      v6e/v7x MXU throughput; exact for integer edge counts, eps==0).
    """
    w1, b1, w2, b2 = params
    N, in_dim = x.shape
    out_dim = w1.shape[1]

    # ---- lane-dense padding (multiples of 128) -----------------------------
    LANE = 128
    in_pad = _round_up(in_dim, LANE)
    out_pad = _round_up(out_dim, LANE)
    n_pad = _round_up(N, LANE)

    # Reassociate (A @ x) @ W1 == A @ (x @ W1): run the dominant N^2 matmul with
    # the smaller (padded) inner dim.
    fuse_w1 = in_pad <= out_pad

    x_p = jnp.zeros((n_pad, in_pad), jnp.float32).at[:N, :in_dim].set(
        x.astype(jnp.float32))
    w1_p = jnp.zeros((in_pad, out_pad), jnp.float32).at[:in_dim, :out_dim].set(w1)
    b1_p = jnp.zeros((1, out_pad), jnp.float32).at[0, :out_dim].set(b1)
    w2_p = jnp.zeros((out_pad, out_pad), jnp.float32).at[:out_dim, :out_dim].set(w2)
    b2_p = jnp.zeros((1, out_pad), jnp.float32).at[0, :out_dim].set(b2)

    # Glue: dense (dst, src) adjacency with (1 + eps)*I folded into the diagonal.
    src, dst = edge_index[0], edge_index[1]
    adj = jnp.zeros((n_pad, n_pad), jnp.float32).at[dst, src].add(1.0)
    diag = jnp.arange(N)
    adj = adj.at[diag, diag].add(1.0 + eps)
    adj = adj.astype(agg_dtype)

    if fuse_w1:
        feat = x_p.astype(agg_dtype)            # aggregation inner dim = in_pad
        k_inner = in_pad
    else:
        feat = (x_p @ w1_p).astype(agg_dtype)   # small glue matmul; inner = out_pad
        k_inner = out_pad

    # ---- tiling -------------------------------------------------------------
    tm = _pick_tile(n_pad, (256, 128))       # destination-row tile (sublane axis)
    tk = _pick_tile(n_pad, (512, 256, 128))  # source-node / reduction tile (lane axis)
    grid = (n_pad // tm, n_pad // tk)

    in_specs = [
        pl.BlockSpec((tm, tk), lambda i, k: (i, k)),        # adj tile (streamed)
        pl.BlockSpec((tk, k_inner), lambda i, k: (k, 0)),   # feature tile (streamed)
    ]
    operands = [adj, feat]
    if fuse_w1:
        in_specs.append(pl.BlockSpec((in_pad, out_pad), lambda i, k: (0, 0)))  # w1 resident
        operands.append(w1_p)
    in_specs += [
        pl.BlockSpec((1, out_pad), lambda i, k: (0, 0)),        # b1 resident
        pl.BlockSpec((out_pad, out_pad), lambda i, k: (0, 0)),  # w2 resident
        pl.BlockSpec((1, out_pad), lambda i, k: (0, 0)),        # b2 resident
    ]
    operands += [b1_p, w2_p, b2_p]

    itemsize = jnp.dtype(agg_dtype).itemsize
    flops = 2 * n_pad * n_pad * k_inner + 2 * n_pad * out_pad * out_pad
    if fuse_w1:
        flops += 2 * n_pad * in_pad * out_pad
    bytes_accessed = (n_pad * n_pad * itemsize + n_pad * k_inner * itemsize
                      + (in_pad + out_pad) * out_pad * 4 + n_pad * out_pad * 4)

    out_padded = pl.pallas_call(
        functools.partial(_gin_kernel, fuse_w1=fuse_w1),
        out_shape=jax.ShapeDtypeStruct((n_pad, out_pad), jnp.float32),
        grid_spec=pltpu.PrefetchScalarGridSpec(
            num_scalar_prefetch=0,
            grid=grid,
            in_specs=in_specs,
            out_specs=pl.BlockSpec((tm, out_pad), lambda i, k: (i, 0)),
            scratch_shapes=[pltpu.VMEM((tm, k_inner), jnp.float32)],
        ),
        compiler_params=pltpu.CompilerParams(
            dimension_semantics=("parallel", "arbitrary"),
            vmem_limit_bytes=32 * 1024 * 1024,
        ),
        cost_estimate=pl.CostEstimate(
            flops=flops, transcendentals=0, bytes_accessed=bytes_accessed),
    )(*operands)

    return out_padded[:N, :out_dim]


def gin_layer_ref(x, edge_index, params, eps=0.0):
    """Pure-JAX reference of GINConv(nn.Sequential(Linear, ReLU, Linear))."""
    w1, b1, w2, b2 = params
    src, dst = edge_index[0], edge_index[1]
    agg = jnp.zeros_like(x).at[dst].add(x[src])
    h = (1.0 + eps) * x + agg
    h1 = jnp.maximum(h @ w1 + b1, 0.0)
    return h1 @ w2 + b2


def init_params(key, in_dim, out_dim):
    # Deterministic synthetic init matching the scale of PyTorch's Linear init.
    k1, k2, k3, k4 = jax.random.split(key, 4)
    lim1 = 1.0 / jnp.sqrt(in_dim)
    lim2 = 1.0 / jnp.sqrt(out_dim)
    w1 = jax.random.uniform(k1, (in_dim, out_dim), jnp.float32, -lim1, lim1)
    b1 = jax.random.uniform(k2, (out_dim,), jnp.float32, -lim1, lim1)
    w2 = jax.random.uniform(k3, (out_dim, out_dim), jnp.float32, -lim2, lim2)
    b2 = jax.random.uniform(k4, (out_dim,), jnp.float32, -lim2, lim2)
    return w1, b1, w2, b2


if __name__ == "__main__":
    key = jax.random.PRNGKey(0)

    # --- Test 1: small layer (in_dim <= out_dim -> W1 fused in-kernel), f32 ---
    N, E, in_dim, out_dim = 16, 32, 16, 32
    kx, ke, kp, kx2, ke2, kp2 = jax.random.split(key, 6)
    x = jax.random.normal(kx, (N, in_dim), jnp.float32)
    edge_index = jax.random.randint(ke, (2, E), 0, N, jnp.int32)
    params = init_params(kp, in_dim, out_dim)

    out = jax.block_until_ready(gin_layer(x, edge_index, params))
    ref = gin_layer_ref(x, edge_index, params)
    assert out.shape == (N, out_dim)
    assert jnp.allclose(out, ref, atol=1e-4, rtol=1e-4), (
        float(jnp.max(jnp.abs(out - ref))))

    # --- Test 2: in_dim > out_dim (reassociated path) with a real multi-tile grid ---
    N2, E2, in2, out2 = 300, 1200, 256, 64
    x2 = jax.random.normal(kx2, (N2, in2), jnp.float32)
    edge_index2 = jax.random.randint(ke2, (2, E2), 0, N2, jnp.int32)
    params2 = init_params(kp2, in2, out2)

    out2_k = jax.block_until_ready(gin_layer(x2, edge_index2, params2))
    ref2 = gin_layer_ref(x2, edge_index2, params2)
    assert out2_k.shape == (N2, out2)
    assert jnp.allclose(out2_k, ref2, atol=5e-3, rtol=5e-3), (
        float(jnp.max(jnp.abs(out2_k - ref2))))

    # --- Test 3: bf16 aggregation operands (v6e/v7x fast path), looser tolerance ---
    out_bf16 = jax.block_until_ready(
        gin_layer(x, edge_index, params, agg_dtype=jnp.bfloat16))
    assert out_bf16.shape == (N, out_dim)
    assert jnp.allclose(out_bf16, ref, atol=0.1, rtol=0.1), (
        float(jnp.max(jnp.abs(out_bf16 - ref))))

    print("KERNEL_OK")
</pallas_src>

<mosaic_0001>
module attributes {stable_mosaic.version = 11 : i64} {
  func.func @_gin_kernel(%arg0: i32, %arg1: i32, %arg2: memref<128x128xf32, #tpu.memory_space<vmem>>, %arg3: memref<128x128xf32, #tpu.memory_space<vmem>>, %arg4: memref<128x128xf32, #tpu.memory_space<vmem>>, %arg5: memref<1x128xf32, #tpu.memory_space<vmem>>, %arg6: memref<128x128xf32, #tpu.memory_space<vmem>>, %arg7: memref<1x128xf32, #tpu.memory_space<vmem>>, %arg8: memref<128x128xf32, #tpu.memory_space<vmem>>, %arg9: memref<128x128xf32, #tpu.memory_space<vmem>>) attributes {dimension_semantics = [#tpu.dimension_semantics<parallel>, #tpu.dimension_semantics<arbitrary>], iteration_bounds = array<i64: 1, 1>, scalar_prefetch = 0 : i64, scratch_operands = 1 : i64, tpu.core_type = #tpu.core_type<tc>, window_params = [{transform_indices = @transform_0, window_bounds = array<i64: 128, 128>}, {transform_indices = @transform_1, window_bounds = array<i64: 128, 128>}, {pipeline_mode = #tpu.pipeline_mode<synchronous>, transform_indices = @transform_2, window_bounds = array<i64: 128, 128>}, {pipeline_mode = #tpu.pipeline_mode<synchronous>, transform_indices = @transform_3, window_bounds = array<i64: 1, 128>}, {pipeline_mode = #tpu.pipeline_mode<synchronous>, transform_indices = @transform_4, window_bounds = array<i64: 128, 128>}, {pipeline_mode = #tpu.pipeline_mode<synchronous>, transform_indices = @transform_5, window_bounds = array<i64: 1, 128>}, {transform_indices = @transform_6, window_bounds = array<i64: 128, 128>}]} {
    %c0_i32 = arith.constant 0 : i32
    %0 = arith.cmpi eq, %arg1, %c0_i32 : i32
    %1 = arith.extui %0 : i1 to i32
    %c0_i32_0 = arith.constant 0 : i32
    %2 = arith.cmpi ne, %1, %c0_i32_0 : i32
    scf.if %2 {
      %cst_10 = arith.constant 0.000000e+00 : f32
      %12 = vector.broadcast %cst_10 : f32 to vector<128x128xf32>
      %c0_11 = arith.constant 0 : index
      %c0_12 = arith.constant 0 : index
      %13 = vector.load %arg9[%c0_11, %c0_12] : memref<128x128xf32, #tpu.memory_space<vmem>>, vector<128x128xf32>
      tpu.vector_store %arg9[%c0_11, %c0_12], %12 {strides = array<i32>} : memref<128x128xf32, #tpu.memory_space<vmem>>, vector<128x128xf32>,
    } else {
    }
    %c0 = arith.constant 0 : index
    %c0_1 = arith.constant 0 : index
    %3 = vector.load %arg9[%c0, %c0_1] : memref<128x128xf32, #tpu.memory_space<vmem>>, vector<128x128xf32>
    %c0_2 = arith.constant 0 : index
    %c0_3 = arith.constant 0 : index
    %4 = vector.load %arg2[%c0_2, %c0_3] : memref<128x128xf32, #tpu.memory_space<vmem>>, vector<128x128xf32>
    %c0_4 = arith.constant 0 : index
    %c0_5 = arith.constant 0 : index
    %5 = vector.load %arg3[%c0_4, %c0_5] : memref<128x128xf32, #tpu.memory_space<vmem>>, vector<128x128xf32>
    %cst = arith.constant dense<0.000000e+00> : vector<128x128xf32>
    %6 = tpu.matmul %4, %5, %cst {dimension_numbers = #tpu.dot_dimension_numbers<[1], [0], [0], [1], [0, 0, 1, 1], [], []>} : vector<128x128xf32>, vector<128x128xf32>, vector<128x128xf32> -> vector<128x128xf32>
    %7 = arith.addf %3, %6 : vector<128x128xf32>
    %c0_6 = arith.constant 0 : index
    %c0_7 = arith.constant 0 : index
    %8 = vector.load %arg9[%c0_6, %c0_7] : memref<128x128xf32, #tpu.memory_space<vmem>>, vector<128x128xf32>
    tpu.vector_store %arg9[%c0_6, %c0_7], %7 {strides = array<i32>} : memref<128x128xf32, #tpu.memory_space<vmem>>, vector<128x128xf32>,
    %c0_i32_8 = arith.constant 0 : i32
    %9 = arith.cmpi eq, %arg1, %c0_i32_8 : i32
    %10 = arith.extui %9 : i1 to i32
    %c0_i32_9 = arith.constant 0 : i32
    %11 = arith.cmpi ne, %10, %c0_i32_9 : i32
    scf.if %11 {
      %c0_10 = arith.constant 0 : index
      %c0_11 = arith.constant 0 : index
      %12 = vector.load %arg9[%c0_10, %c0_11] : memref<128x128xf32, #tpu.memory_space<vmem>>, vector<128x128xf32>
      %c0_12 = arith.constant 0 : index
      %c0_13 = arith.constant 0 : index
      %13 = vector.load %arg4[%c0_12, %c0_13] : memref<128x128xf32, #tpu.memory_space<vmem>>, vector<128x128xf32>
      %cst_14 = arith.constant dense<0.000000e+00> : vector<128x128xf32>
      %14 = tpu.matmul %12, %13, %cst_14 {dimension_numbers = #tpu.dot_dimension_numbers<[1], [0], [0], [1], [0, 0, 1, 1], [], []>} : vector<128x128xf32>, vector<128x128xf32>, vector<128x128xf32> -> vector<128x128xf32>
      %c0_15 = arith.constant 0 : index
      %c0_16 = arith.constant 0 : index
      %15 = vector.load %arg5[%c0_15, %c0_16] : memref<1x128xf32, #tpu.memory_space<vmem>>, vector<1x128xf32>
      %16 = vector.broadcast %15 : vector<1x128xf32> to vector<128x128xf32>
      %17 = arith.addf %14, %16 : vector<128x128xf32>
      %cst_17 = arith.constant 0.000000e+00 : f32
      %18 = vector.broadcast %cst_17 : f32 to vector<128x128xf32>
      %19 = arith.maximumf %17, %18 : vector<128x128xf32>
      %c0_18 = arith.constant 0 : index
      %c0_19 = arith.constant 0 : index
      %20 = vector.load %arg6[%c0_18, %c0_19] : memref<128x128xf32, #tpu.memory_space<vmem>>, vector<128x128xf32>
      %cst_20 = arith.constant dense<0.000000e+00> : vector<128x128xf32>
      %21 = tpu.matmul %19, %20, %cst_20 {dimension_numbers = #tpu.dot_dimension_numbers<[1], [0], [0], [1], [0, 0, 1, 1], [], []>} : vector<128x128xf32>, vector<128x128xf32>, vector<128x128xf32> -> vector<128x128xf32>
      %c0_21 = arith.constant 0 : index
      %c0_22 = arith.constant 0 : index
      %22 = vector.load %arg7[%c0_21, %c0_22] : memref<1x128xf32, #tpu.memory_space<vmem>>, vector<1x128xf32>
      %23 = vector.broadcast %22 : vector<1x128xf32> to vector<128x128xf32>
      %24 = arith.addf %21, %23 : vector<128x128xf32>
      %c0_23 = arith.constant 0 : index
      %c0_24 = arith.constant 0 : index
      %25 = vector.load %arg8[%c0_23, %c0_24] : memref<128x128xf32, #tpu.memory_space<vmem>>, vector<128x128xf32>
      tpu.vector_store %arg8[%c0_23, %c0_24], %24 {strides = array<i32>} : memref<128x128xf32, #tpu.memory_space<vmem>>, vector<128x128xf32>,
    } else {
    }
    return
  }
  func.func @transform_0(%arg0: i32, %arg1: i32) -> (i32, i32) {
    %c0_i32 = arith.constant 0 : i32
    return %arg0, %arg1 : i32, i32
  }
  func.func @transform_1(%arg0: i32, %arg1: i32) -> (i32, i32) {
    %c0_i32 = arith.constant 0 : i32
    %c0_i32_0 = arith.constant 0 : i32
    return %arg1, %c0_i32 : i32, i32
  }
  func.func @transform_2(%arg0: i32, %arg1: i32) -> (i32, i32) {
    %c0_i32 = arith.constant 0 : i32
    %c0_i32_0 = arith.constant 0 : i32
    %c0_i32_1 = arith.constant 0 : i32
    return %c0_i32, %c0_i32_0 : i32, i32
  }
  func.func @transform_3(%arg0: i32, %arg1: i32) -> (i32, i32) {
    %c0_i32 = arith.constant 0 : i32
    %c0_i32_0 = arith.constant 0 : i32
    %c0_i32_1 = arith.constant 0 : i32
    return %c0_i32, %c0_i32_0 : i32, i32
  }
  func.func @transform_4(%arg0: i32, %arg1: i32) -> (i32, i32) {
    %c0_i32 = arith.constant 0 : i32
    %c0_i32_0 = arith.constant 0 : i32
    %c0_i32_1 = arith.constant 0 : i32
    return %c0_i32, %c0_i32_0 : i32, i32
  }
  func.func @transform_5(%arg0: i32, %arg1: i32) -> (i32, i32) {
    %c0_i32 = arith.constant 0 : i32
    %c0_i32_0 = arith.constant 0 : i32
    %c0_i32_1 = arith.constant 0 : i32
    return %c0_i32, %c0_i32_0 : i32, i32
  }
  func.func @transform_6(%arg0: i32, %arg1: i32) -> (i32, i32) {
    %c0_i32 = arith.constant 0 : i32
    %c0_i32_0 = arith.constant 0 : i32
    return %arg0, %c0_i32 : i32, i32
  }
}

</mosaic_0001>

<llo_original>
// kernel: tpu_custom_call.1
$region0: #{tpu_custom_call.1}
  #allocation0 [shape = 'u32[]', space=smem, size = 0x4, offset = 0x4, fixed_abs, tag = 'smem constant byte address 0x4 - core index']
  #allocation1 [shape = 'u32[144,128]{1,0:T(1,128)}', space=vmem, size = 0x12000, scoped, tag = 'internal scratch']
  #allocation2 [shape = 'f32[128,128]{1,0:T(8,128)}', space=vmem, size = 0x10000, scoped, tag = 'scratch operand']
  %s0 = inlined_call_operand.hbm [shape: f32[128,128], index: 0, kind: input, shape index: {}]
  %s1 = inlined_call_operand.hbm [shape: f32[128,128], index: 1, kind: input, shape index: {}]
  %s2 = inlined_call_operand.hbm [shape: f32[128,128], index: 2, kind: input, shape index: {}]
  %s3 = inlined_call_operand.vmem [shape: f32[1,128], index: 3, kind: input, shape index: {}]
  %s4 = inlined_call_operand.hbm [shape: f32[128,128], index: 4, kind: input, shape index: {}]
  %s5 = inlined_call_operand.vmem [shape: f32[1,128], index: 5, kind: input, shape index: {}]
  %s6 = inlined_call_operand.hbm [shape: f32[128,128], index: 6, kind: output, shape index: {}]
  %s7 = sld [smem:[#allocation0]]
  $region58: #{tpu_custom_call.1} parent=0
    _
  %s9 = ssub.s32 1, %s7
  %s10 = scalar_select 0, %s9, %s7
  $region1: #{tpu_custom_call.1} parent=0
    #allocation3 [shape = 'u8[65536]{0}', space=vmem, size = 0x10000, scoped, tag = 'input window, operand 0, single buffered']
    #allocation4 [shape = 's32[1]{0}', space=sflag, size = 0x4, scoped, tag = 'scoped memory for tpu_custom_call.1']
    #allocation5 [shape = 's32[1]{0}', space=sflag, size = 0x4, scoped, tag = 'scoped memory for tpu_custom_call.1']
    #allocation6 [shape = 'u8[65536]{0}', space=vmem, size = 0x10000, scoped, tag = 'input window, operand 1, single buffered']
    #allocation7 [shape = 's32[1]{0}', space=sflag, size = 0x4, scoped, tag = 'scoped memory for tpu_custom_call.1']
    #allocation8 [shape = 'u8[65536]{0}', space=vmem, size = 0x10000, scoped, tag = 'input window, operand 2, single buffered']
    #allocation9 [shape = 'u8[65536]{0}', space=vmem, size = 0x10000, scoped, tag = 'input window, operand 4, single buffered']
    #allocation10 [shape = 's32[1]{0}', space=sflag, size = 0x4, scoped, tag = 'scoped memory for tpu_custom_call.1']
    #allocation11 [shape = 'u8[65536]{0}', space=vmem, size = 0x10000, scoped, tag = 'output window, operand 0, single buffered']
    %11 = vsyncpa [#allocation4], 0
    %12 = vsyncpa [#allocation7], 0
    %13 = vsyncpa [#allocation10], 0
    %14 = vsyncpa [#allocation5], 0
    // Predicated region
    $region2: #{tpu_custom_call.1} parent=1 // pred_check
      _
    $region3: #{tpu_custom_call.1} parent=1 // pred_check_branch
      %16 = sbr.rel (0) target = $region5
    $region4: #{tpu_custom_call.1} parent=1 // pred_region
      %s18 = ssub.s32 2048, 2048
      %19 = vsyncadd [#allocation4], %s18
      %s20 = sshll.u32 [#allocation3], 4
      %s21 = int_to_ptr.vmem [resolvable:$true] %s20
      %26 = dma.hbm_to_vmem [thread:$0]  %s0, 2048, %s21, [#allocation4], 128, 128, 8
    $region5: #{tpu_custom_call.1} parent=1 // pred_fallthru
      _
    // Predicated region
    $region6: #{tpu_custom_call.1} parent=1 // pred_check
      _
    $region7: #{tpu_custom_call.1} parent=1 // pred_check_branch
      %28 = sbr.rel (0) target = $region9
    $region8: #{tpu_custom_call.1} parent=1 // pred_region
      %s30 = ssub.s32 2048, 2048
      %31 = vsyncadd [#allocation7], %s30
      %s32 = sshll.u32 [#allocation6], 4
      %s33 = int_to_ptr.vmem [resolvable:$true] %s32
      %38 = dma.hbm_to_vmem [thread:$0]  %s1, 2048, %s33, [#allocation7], 128, 128, 8
    $region9: #{tpu_custom_call.1} parent=1 // pred_fallthru
      _
    // Predicated region
    $region10: #{tpu_custom_call.1} parent=1 // pred_check
      _
    $region11: #{tpu_custom_call.1} parent=1 // pred_check_branch
      %40 = sbr.rel (0) target = $region13
    $region12: #{tpu_custom_call.1} parent=1 // pred_region
      %s42 = ssub.s32 2048, 2048
      %43 = vsyncadd [#allocation7], %s42
      %s44 = sshll.u32 [#allocation8], 4
      %s45 = int_to_ptr.vmem [resolvable:$true] %s44
      %50 = dma.hbm_to_vmem [thread:$0]  %s2, 2048, %s45, [#allocation7], 128, 128, 8
    $region13: #{tpu_custom_call.1} parent=1 // pred_fallthru
      _
    // Predicated region
    $region14: #{tpu_custom_call.1} parent=1 // pred_check
      _
    $region15: #{tpu_custom_call.1} parent=1 // pred_check_branch
      %52 = sbr.rel (0) target = $region17
    $region16: #{tpu_custom_call.1} parent=1 // pred_region
      _
    $region17: #{tpu_custom_call.1} parent=1 // pred_fallthru
      _
    // Predicated region
    $region18: #{tpu_custom_call.1} parent=1 // pred_check
      _
    $region19: #{tpu_custom_call.1} parent=1 // pred_check_branch
      %54 = sbr.rel (0) target = $region21
    $region20: #{tpu_custom_call.1} parent=1 // pred_region
      %s56 = ssub.s32 2048, 2048
      %57 = vsyncadd [#allocation10], %s56
      %s58 = sshll.u32 [#allocation9], 4
      %s59 = int_to_ptr.vmem [resolvable:$true] %s58
      %64 = dma.hbm_to_vmem [thread:$0]  %s4, 2048, %s59, [#allocation10], 128, 128, 8
    $region21: #{tpu_custom_call.1} parent=1 // pred_fallthru
      _
    // Predicated region
    $region22: #{tpu_custom_call.1} parent=1 // pred_check
      _
    $region23: #{tpu_custom_call.1} parent=1 // pred_check_branch
      %66 = sbr.rel (0) target = $region25
    $region24: #{tpu_custom_call.1} parent=1 // pred_region
      _
    $region25: #{tpu_custom_call.1} parent=1 // pred_fallthru
      _
    // Predicated region
    $region26: #{tpu_custom_call.1} parent=1 // pred_check
      _
    $region27: #{tpu_custom_call.1} parent=1 // pred_check_branch
      %68 = sbr.rel (0) target = $region29
    $region28: #{tpu_custom_call.1} parent=1 // pred_region
      %69 = dma.done [#allocation4], 2048
    $region29: #{tpu_custom_call.1} parent=1 // pred_fallthru
      _
    // Predicated region
    $region30: #{tpu_custom_call.1} parent=1 // pred_check
      _
    $region31: #{tpu_custom_call.1} parent=1 // pred_check_branch
      %71 = sbr.rel (0) target = $region33
    $region32: #{tpu_custom_call.1} parent=1 // pred_region
      %72 = dma.done [#allocation7], 2048
    $region33: #{tpu_custom_call.1} parent=1 // pred_fallthru
      _
    // Predicated region
    $region34: #{tpu_custom_call.1} parent=1 // pred_check
      _
    $region35: #{tpu_custom_call.1} parent=1 // pred_check_branch
      %74 = sbr.rel (0) target = $region37
    $region36: #{tpu_custom_call.1} parent=1 // pred_region
      %75 = dma.done [#allocation7], 2048
    $region37: #{tpu_custom_call.1} parent=1 // pred_fallthru
      _
    // Predicated region
    $region38: #{tpu_custom_call.1} parent=1 // pred_check
      _
    $region39: #{tpu_custom_call.1} parent=1 // pred_check_branch
      %77 = sbr.rel (0) target = $region41
    $region40: #{tpu_custom_call.1} parent=1 // pred_region
      %78 = dma.done [#allocation10], 2048
    $region41: #{tpu_custom_call.1} parent=1 // pred_fallthru
      _
    %p79 = scmp.eq.s32.totalorder 0, 0
    // Predicated region
    $region42: #{tpu_custom_call.1} parent=1 // pred_check
      %p80 = pneg %p79
    $region43: #{tpu_custom_call.1} parent=1 // pred_check_branch
      %82 = sbr.rel (%p80) target = $region45
    $region44: #{tpu_custom_call.1} parent=1 // pred_region
      %83 = vst [vmem:[#allocation2] sm:$0xff] 0.0
      %84 = vst [vmem:[#allocation2 + $0x8] sm:$0xff] 0.0
      %85 = vst [vmem:[#allocation2 + $0x10] sm:$0xff] 0.0
      %86 = vst [vmem:[#allocation2 + $0x18] sm:$0xff] 0.0
      %87 = vst [vmem:[#allocation2 + $0x20] sm:$0xff] 0.0
      %88 = vst [vmem:[#allocation2 + $0x28] sm:$0xff] 0.0
      %89 = vst [vmem:[#allocation2 + $0x30] sm:$0xff] 0.0
      %90 = vst [vmem:[#allocation2 + $0x38] sm:$0xff] 0.0
      %91 = vst [vmem:[#allocation2 + $0x40] sm:$0xff] 0.0
      %92 = vst [vmem:[#allocation2 + $0x48] sm:$0xff] 0.0
      %93 = vst [vmem:[#allocation2 + $0x50] sm:$0xff] 0.0
      %94 = vst [vmem:[#allocation2 + $0x58] sm:$0xff] 0.0
      %95 = vst [vmem:[#allocation2 + $0x60] sm:$0xff] 0.0
      %96 = vst [vmem:[#allocation2 + $0x68] sm:$0xff] 0.0
      %97 = vst [vmem:[#allocation2 + $0x70] sm:$0xff] 0.0
      %98 = vst [vmem:[#allocation2 + $0x78] sm:$0xff] 0.0
    $region45: #{tpu_custom_call.1} parent=1 // pred_fallthru
      _
    %v99 = vld [vmem:[#allocation2] sm:$0xff]
    %v100 = vld [vmem:[#allocation2 + $0x8] sm:$0xff]
    %v101 = vld [vmem:[#allocation2 + $0x10] sm:$0xff]
    %v102 = vld [vmem:[#allocation2 + $0x18] sm:$0xff]
    %v103 = vld [vmem:[#allocation2 + $0x20] sm:$0xff]
    %v104 = vld [vmem:[#allocation2 + $0x28] sm:$0xff]
    %v105 = vld [vmem:[#allocation2 + $0x30] sm:$0xff]
    %v106 = vld [vmem:[#allocation2 + $0x38] sm:$0xff]
    %v107 = vld [vmem:[#allocation2 + $0x40] sm:$0xff]
    %v108 = vld [vmem:[#allocation2 + $0x48] sm:$0xff]
    %v109 = vld [vmem:[#allocation2 + $0x50] sm:$0xff]
    %v110 = vld [vmem:[#allocation2 + $0x58] sm:$0xff]
    %v111 = vld [vmem:[#allocation2 + $0x60] sm:$0xff]
    %v112 = vld [vmem:[#allocation2 + $0x68] sm:$0xff]
    %v113 = vld [vmem:[#allocation2 + $0x70] sm:$0xff]
    %v114 = vld [vmem:[#allocation2 + $0x78] sm:$0xff]
    %v115 = vld [vmem:[#allocation3] sm:$0xff]
    %v116 = vld [vmem:[#allocation3 + $0x8] sm:$0xff]
    %v117 = vld [vmem:[#allocation3 + $0x10] sm:$0xff]
    %v118 = vld [vmem:[#allocation3 + $0x18] sm:$0xff]
    %v119 = vld [vmem:[#allocation3 + $0x20] sm:$0xff]
    %v120 = vld [vmem:[#allocation3 + $0x28] sm:$0xff]
    %v121 = vld [vmem:[#allocation3 + $0x30] sm:$0xff]
    %v122 = vld [vmem:[#allocation3 + $0x38] sm:$0xff]
    %v123 = vld [vmem:[#allocation3 + $0x40] sm:$0xff]
    %v124 = vld [vmem:[#allocation3 + $0x48] sm:$0xff]
    %v125 = vld [vmem:[#allocation3 + $0x50] sm:$0xff]
    %v126 = vld [vmem:[#allocation3 + $0x58] sm:$0xff]
    %v127 = vld [vmem:[#allocation3 + $0x60] sm:$0xff]
    %v128 = vld [vmem:[#allocation3 + $0x68] sm:$0xff]
    %v129 = vld [vmem:[#allocation3 + $0x70] sm:$0xff]
    %v130 = vld [vmem:[#allocation3 + $0x78] sm:$0xff]
    %v131 = vld [vmem:[#allocation6] sm:$0xff]
    %v132 = vld [vmem:[#allocation6 + $0x8] sm:$0xff]
    %v133 = vld [vmem:[#allocation6 + $0x10] sm:$0xff]
    %v134 = vld [vmem:[#allocation6 + $0x18] sm:$0xff]
    %v135 = vld [vmem:[#allocation6 + $0x20] sm:$0xff]
    %v136 = vld [vmem:[#allocation6 + $0x28] sm:$0xff]
    %v137 = vld [vmem:[#allocation6 + $0x30] sm:$0xff]
    %v138 = vld [vmem:[#allocation6 + $0x38] sm:$0xff]
    %v139 = vld [vmem:[#allocation6 + $0x40] sm:$0xff]
    %v140 = vld [vmem:[#allocation6 + $0x48] sm:$0xff]
    %v141 = vld [vmem:[#allocation6 + $0x50] sm:$0xff]
    %v142 = vld [vmem:[#allocation6 + $0x58] sm:$0xff]
    %v143 = vld [vmem:[#allocation6 + $0x60] sm:$0xff]
    %v144 = vld [vmem:[#allocation6 + $0x68] sm:$0xff]
    %v145 = vld [vmem:[#allocation6 + $0x70] sm:$0xff]
    %v146 = vld [vmem:[#allocation6 + $0x78] sm:$0xff]
    %147 = vmatprep.subr.mxu0 0.0
    %148 = vmatpush1.msra.mxu0 %v131
    %149 = vmatprep.subr.mxu0 0.0
    %150 = vmatpush1.msra.mxu0 %v132
    %151 = vmatprep.subr.mxu0 0.0
    %152 = vmatpush1.msra.mxu0 %v133
    %153 = vmatprep.subr.mxu0 0.0
    %154 = vmatpush1.msra.mxu0 %v134
    %155 = vmatprep.subr.mxu0 0.0
    %156 = vmatpush1.msra.mxu0 %v135
    %157 = vmatprep.subr.mxu0 0.0
    %158 = vmatpush1.msra.mxu0 %v136
    %159 = vmatprep.subr.mxu0 0.0
    %160 = vmatpush1.msra.mxu0 %v137
    %161 = vmatprep.subr.mxu0 0.0
    %162 = vmatpush1.msra.mxu0 %v138
    %163 = vmatprep.subr.mxu0 0.0
    %164 = vmatpush1.msra.mxu0 %v139
    %165 = vmatprep.subr.mxu0 0.0
    %166 = vmatpush1.msra.mxu0 %v140
    %167 = vmatprep.subr.mxu0 0.0
    %168 = vmatpush1.msra.mxu0 %v141
    %169 = vmatprep.subr.mxu0 0.0
    %170 = vmatpush1.msra.mxu0 %v142
    %171 = vmatprep.subr.mxu0 0.0
    %172 = vmatpush1.msra.mxu0 %v143
    %173 = vmatprep.subr.mxu0 0.0
    %174 = vmatpush1.msra.mxu0 %v144
    %175 = vmatprep.subr.mxu0 0.0
    %176 = vmatpush1.msra.mxu0 %v145
    %177 = vmatprep.subr.mxu0 0.0
    %178 = vmatpush1.msra.mxu0 %v146
    %179 = vmatprep.subr.mxu0 0.0
    %180 = vmatpush1.msra.mxu0 0.0
    %181 = vmatprep.subr.mxu0 0.0
    %182 = vmatpush1.msra.mxu0 0.0
    %183 = vmatprep.subr.mxu0 0.0
    %184 = vmatpush1.msra.mxu0 0.0
    %185 = vmatprep.subr.mxu0 0.0
    %186 = vmatpush1.msra.mxu0 0.0
    %187 = vmatprep.subr.mxu0 0.0
    %188 = vmatpush1.msra.mxu0 0.0
    %189 = vmatprep.subr.mxu0 0.0
    %190 = vmatpush1.msra.mxu0 0.0
    %191 = vmatprep.subr.mxu0 0.0
    %192 = vmatpush1.msra.mxu0 0.0
    %193 = vmatprep.subr.mxu0 0.0
    %194 = vmatpush1.msra.mxu0 0.0
    %195 = vmatprep.subr.mxu0 0.0
    %196 = vmatpush1.msra.mxu0 0.0
    %197 = vmatprep.subr.mxu0 0.0
    %198 = vmatpush1.msra.mxu0 0.0
    %199 = vmatprep.subr.mxu0 0.0
    %200 = vmatpush1.msra.mxu0 0.0
    %201 = vmatprep.subr.mxu0 0.0
    %202 = vmatpush1.msra.mxu0 0.0
    %203 = vmatprep.subr.mxu0 0.0
    %204 = vmatpush1.msra.mxu0 0.0
    %205 = vmatprep.subr.mxu0 0.0
    %206 = vmatpush1.msra.mxu0 0.0
    %207 = vmatprep.subr.mxu0 0.0
    %208 = vmatpush1.msra.mxu0 0.0
    %209 = vmatprep.subr.mxu0 0.0
    %210 = vmatpush1.msra.mxu0 0.0
    %211 = vmatprep.mubr.f32.mxu0 0.0
    %212 = vmatmul.mubr.f32.gmra.mrb[0].mxu0 %v115
    %v213 = vpop.f32.mrb[0].mxu0
    %v214 = vadd.f32 0.0, %v213
    %v215 = vpop.f32.mrb[0].mxu0
    %216 = vmatprep.mubr.f32.mxu0 0.0
    %217 = vmatmul.mubr.f32.gmra.mrb[0].mxu0 %v116
    %v218 = vpop.f32.mrb[0].mxu0
    %v219 = vadd.f32 0.0, %v218
    %v220 = vpop.f32.mrb[0].mxu0
    %221 = vmatprep.mubr.f32.mxu0 0.0
    %222 = vmatmul.mubr.f32.gmra.mrb[0].mxu0 %v117
    %v223 = vpop.f32.mrb[0].mxu0
    %v224 = vadd.f32 0.0, %v223
    %v225 = vpop.f32.mrb[0].mxu0
    %226 = vmatprep.mubr.f32.mxu0 0.0
    %227 = vmatmul.mubr.f32.gmra.mrb[0].mxu0 %v118
    %v228 = vpop.f32.mrb[0].mxu0
    %v229 = vadd.f32 0.0, %v228
    %v230 = vpop.f32.mrb[0].mxu0
    %231 = vmatprep.mubr.f32.mxu0 0.0
    %232 = vmatmul.mubr.f32.gmra.mrb[0].mxu0 %v119
    %v233 = vpop.f32.mrb[0].mxu0
    %v234 = vadd.f32 0.0, %v233
    %v235 = vpop.f32.mrb[0].mxu0
    %236 = vmatprep.mubr.f32.mxu0 0.0
    %237 = vmatmul.mubr.f32.gmra.mrb[0].mxu0 %v120
    %v238 = vpop.f32.mrb[0].mxu0
    %v239 = vadd.f32 0.0, %v238
    %v240 = vpop.f32.mrb[0].mxu0
    %241 = vmatprep.mubr.f32.mxu0 0.0
    %242 = vmatmul.mubr.f32.gmra.mrb[0].mxu0 %v121
    %v243 = vpop.f32.mrb[0].mxu0
    %v244 = vadd.f32 0.0, %v243
    %v245 = vpop.f32.mrb[0].mxu0
    %246 = vmatprep.mubr.f32.mxu0 0.0
    %247 = vmatmul.mubr.f32.gmra.mrb[0].mxu0 %v122
    %v248 = vpop.f32.mrb[0].mxu0
    %v249 = vadd.f32 0.0, %v248
    %v250 = vpop.f32.mrb[0].mxu0
    %251 = vmatprep.mubr.f32.mxu0 0.0
    %252 = vmatmul.mubr.f32.gmra.mrb[0].mxu0 %v123
    %v253 = vpop.f32.mrb[0].mxu0
    %v254 = vadd.f32 0.0, %v253
    %v255 = vpop.f32.mrb[0].mxu0
    %256 = vmatprep.mubr.f32.mxu0 0.0
    %257 = vmatmul.mubr.f32.gmra.mrb[0].mxu0 %v124
    %v258 = vpop.f32.mrb[0].mxu0
    %v259 = vadd.f32 0.0, %v258
    %v260 = vpop.f32.mrb[0].mxu0
    %261 = vmatprep.mubr.f32.mxu0 0.0
    %262 = vmatmul.mubr.f32.gmra.mrb[0].mxu0 %v125
    %v263 = vpop.f32.mrb[0].mxu0
    %v264 = vadd.f32 0.0, %v263
    %v265 = vpop.f32.mrb[0].mxu0
    %266 = vmatprep.mubr.f32.mxu0 0.0
    %267 = vmatmul.mubr.f32.gmra.mrb[0].mxu0 %v126
    %v268 = vpop.f32.mrb[0].mxu0
    %v269 = vadd.f32 0.0, %v268
    %v270 = vpop.f32.mrb[0].mxu0
    %271 = vmatprep.mubr.f32.mxu0 0.0
    %272 = vmatmul.mubr.f32.gmra.mrb[0].mxu0 %v127
    %v273 = vpop.f32.mrb[0].mxu0
    %v274 = vadd.f32 0.0, %v273
    %v275 = vpop.f32.mrb[0].mxu0
    %276 = vmatprep.mubr.f32.mxu0 0.0
    %277 = vmatmul.mubr.f32.gmra.mrb[0].mxu0 %v128
    %v278 = vpop.f32.mrb[0].mxu0
    %v279 = vadd.f32 0.0, %v278
    %v280 = vpop.f32.mrb[0].mxu0
    %281 = vmatprep.mubr.f32.mxu0 0.0
    %282 = vmatmul.mubr.f32.gmra.mrb[0].mxu0 %v129
    %v283 = vpop.f32.mrb[0].mxu0
    %v284 = vadd.f32 0.0, %v283
    %v285 = vpop.f32.mrb[0].mxu0
    %286 = vmatprep.mubr.f32.mxu0 0.0
    %287 = vmatmul.mubr.f32.gmra.mrb[0].mxu0 %v130
    %v288 = vpop.f32.mrb[0].mxu0
    %v289 = vadd.f32 0.0, %v288
    %v290 = vpop.f32.mrb[0].mxu0
    %291 = vdwg.mxu0
    %v292 = vadd.f32 %v99, %v214
    %v293 = vadd.f32 %v100, %v219
    %v294 = vadd.f32 %v101, %v224
    %v295 = vadd.f32 %v102, %v229
    %v296 = vadd.f32 %v103, %v234
    %v297 = vadd.f32 %v104, %v239
    %v298 = vadd.f32 %v105, %v244
    %v299 = vadd.f32 %v106, %v249
    %v300 = vadd.f32 %v107, %v254
    %v301 = vadd.f32 %v108, %v259
    %v302 = vadd.f32 %v109, %v264
    %v303 = vadd.f32 %v110, %v269
    %v304 = vadd.f32 %v111, %v274
    %v305 = vadd.f32 %v112, %v279
    %v306 = vadd.f32 %v113, %v284
    %v307 = vadd.f32 %v114, %v289
    %308 = vst [vmem:[#allocation2] sm:$0xff] %v292
    %309 = vst [vmem:[#allocation2 + $0x8] sm:$0xff] %v293
    %310 = vst [vmem:[#allocation2 + $0x10] sm:$0xff] %v294
    %311 = vst [vmem:[#allocation2 + $0x18] sm:$0xff] %v295
    %312 = vst [vmem:[#allocation2 + $0x20] sm:$0xff] %v296
    %313 = vst [vmem:[#allocation2 + $0x28] sm:$0xff] %v297
    %314 = vst [vmem:[#allocation2 + $0x30] sm:$0xff] %v298
    %315 = vst [vmem:[#allocation2 + $0x38] sm:$0xff] %v299
    %316 = vst [vmem:[#allocation2 + $0x40] sm:$0xff] %v300
    %317 = vst [vmem:[#allocation2 + $0x48] sm:$0xff] %v301
    %318 = vst [vmem:[#allocation2 + $0x50] sm:$0xff] %v302
    %319 = vst [vmem:[#allocation2 + $0x58] sm:$0xff] %v303
    %320 = vst [vmem:[#allocation2 + $0x60] sm:$0xff] %v304
    %321 = vst [vmem:[#allocation2 + $0x68] sm:$0xff] %v305
    %322 = vst [vmem:[#allocation2 + $0x70] sm:$0xff] %v306
    %323 = vst [vmem:[#allocation2 + $0x78] sm:$0xff] %v307
    // Predicated region
    $region46: #{tpu_custom_call.1} parent=1 // pred_check
      %p324 = pneg %p79
    $region47: #{tpu_custom_call.1} parent=1 // pred_check_branch
      %326 = sbr.rel (%p324) target = $region49
    $region48: #{tpu_custom_call.1} parent=1 // pred_region
      %v327 = vld [vmem:[#allocation2] sm:$0xff]
      %v328 = vld [vmem:[#allocation2 + $0x8] sm:$0xff]
      %v329 = vld [vmem:[#allocation2 + $0x10] sm:$0xff]
      %v330 = vld [vmem:[#allocation2 + $0x18] sm:$0xff]
      %v331 = vld [vmem:[#allocation2 + $0x20] sm:$0xff]
      %v332 = vld [vmem:[#allocation2 + $0x28] sm:$0xff]
      %v333 = vld [vmem:[#allocation2 + $0x30] sm:$0xff]
      %v334 = vld [vmem:[#allocation2 + $0x38] sm:$0xff]
      %v335 = vld [vmem:[#allocation2 + $0x40] sm:$0xff]
      %v336 = vld [vmem:[#allocation2 + $0x48] sm:$0xff]
      %v337 = vld [vmem:[#allocation2 + $0x50] sm:$0xff]
      %v338 = vld [vmem:[#allocation2 + $0x58] sm:$0xff]
      %v339 = vld [vmem:[#allocation2 + $0x60] sm:$0xff]
      %v340 = vld [vmem:[#allocation2 + $0x68] sm:$0xff]
      %v341 = vld [vmem:[#allocation2 + $0x70] sm:$0xff]
      %v342 = vld [vmem:[#allocation2 + $0x78] sm:$0xff]
      %v343 = vld [vmem:[#allocation8] sm:$0xff]
      %v344 = vld [vmem:[#allocation8 + $0x8] sm:$0xff]
      %v345 = vld [vmem:[#allocation8 + $0x10] sm:$0xff]
      %v346 = vld [vmem:[#allocation8 + $0x18] sm:$0xff]
      %v347 = vld [vmem:[#allocation8 + $0x20] sm:$0xff]
      %v348 = vld [vmem:[#allocation8 + $0x28] sm:$0xff]
      %v349 = vld [vmem:[#allocation8 + $0x30] sm:$0xff]
      %v350 = vld [vmem:[#allocation8 + $0x38] sm:$0xff]
      %v351 = vld [vmem:[#allocation8 + $0x40] sm:$0xff]
      %v352 = vld [vmem:[#allocation8 + $0x48] sm:$0xff]
      %v353 = vld [vmem:[#allocation8 + $0x50] sm:$0xff]
      %v354 = vld [vmem:[#allocation8 + $0x58] sm:$0xff]
      %v355 = vld [vmem:[#allocation8 + $0x60] sm:$0xff]
      %v356 = vld [vmem:[#allocation8 + $0x68] sm:$0xff]
      %v357 = vld [vmem:[#allocation8 + $0x70] sm:$0xff]
      %v358 = vld [vmem:[#allocation8 + $0x78] sm:$0xff]
      %v359 = vld [vmem:[%s3] sm:$0x1]
      %v361 = vlaneseq
      %v362 = vshrl.u32 %v361, 7
      %v363 = vsub.s32 0, %v362
      %v364 = vrot.slane %v359, %v363
      %366 = vmatprep.subr.mxu0 0.0
      %367 = vmatpush1.msra.mxu0 %v343
      %368 = vmatprep.subr.mxu0 0.0
      %369 = vmatpush1.msra.mxu0 %v344
      %370 = vmatprep.subr.mxu0 0.0
      %371 = vmatpush1.msra.mxu0 %v345
      %372 = vmatprep.subr.mxu0 0.0
      %373 = vmatpush1.msra.mxu0 %v346
      %374 = vmatprep.subr.mxu0 0.0
      %375 = vmatpush1.msra.mxu0 %v347
      %376 = vmatprep.subr.mxu0 0.0
      %377 = vmatpush1.msra.mxu0 %v348
      %378 = vmatprep.subr.mxu0 0.0
      %379 = vmatpush1.msra.mxu0 %v349
      %380 = vmatprep.subr.mxu0 0.0
      %381 = vmatpush1.msra.mxu0 %v350
      %382 = vmatprep.subr.mxu0 0.0
      %383 = vmatpush1.msra.mxu0 %v351
      %384 = vmatprep.subr.mxu0 0.0
      %385 = vmatpush1.msra.mxu0 %v352
      %386 = vmatprep.subr.mxu0 0.0
      %387 = vmatpush1.msra.mxu0 %v353
      %388 = vmatprep.subr.mxu0 0.0
      %389 = vmatpush1.msra.mxu0 %v354
      %390 = vmatprep.subr.mxu0 0.0
      %391 = vmatpush1.msra.mxu0 %v355
      %392 = vmatprep.subr.mxu0 0.0
      %393 = vmatpush1.msra.mxu0 %v356
      %394 = vmatprep.subr.mxu0 0.0
      %395 = vmatpush1.msra.mxu0 %v357
      %396 = vmatprep.subr.mxu0 0.0
      %397 = vmatpush1.msra.mxu0 %v358
      %398 = vmatprep.subr.mxu0 0.0
      %399 = vmatpush1.msra.mxu0 0.0
      %400 = vmatprep.subr.mxu0 0.0
      %401 = vmatpush1.msra.mxu0 0.0
      %402 = vmatprep.subr.mxu0 0.0
      %403 = vmatpush1.msra.mxu0 0.0
      %404 = vmatprep.subr.mxu0 0.0
      %405 = vmatpush1.msra.mxu0 0.0
      %406 = vmatprep.subr.mxu0 0.0
      %407 = vmatpush1.msra.mxu0 0.0
      %408 = vmatprep.subr.mxu0 0.0
      %409 = vmatpush1.msra.mxu0 0.0
      %410 = vmatprep.subr.mxu0 0.0
      %411 = vmatpush1.msra.mxu0 0.0
      %412 = vmatprep.subr.mxu0 0.0
      %413 = vmatpush1.msra.mxu0 0.0
      %414 = vmatprep.subr.mxu0 0.0
      %415 = vmatpush1.msra.mxu0 0.0
      %416 = vmatprep.subr.mxu0 0.0
      %417 = vmatpush1.msra.mxu0 0.0
      %418 = vmatprep.subr.mxu0 0.0
      %419 = vmatpush1.msra.mxu0 0.0
      %420 = vmatprep.subr.mxu0 0.0
      %421 = vmatpush1.msra.mxu0 0.0
      %422 = vmatprep.subr.mxu0 0.0
      %423 = vmatpush1.msra.mxu0 0.0
      %424 = vmatprep.subr.mxu0 0.0
      %425 = vmatpush1.msra.mxu0 0.0
      %426 = vmatprep.subr.mxu0 0.0
      %427 = vmatpush1.msra.mxu0 0.0
      %428 = vmatprep.subr.mxu0 0.0
      %429 = vmatpush1.msra.mxu0 0.0
      %430 = vmatprep.mubr.f32.mxu0 0.0
      %431 = vmatmul.mubr.f32.gmra.mrb[0].mxu0 %v327
      %v432 = vpop.f32.mrb[0].mxu0
      %v433 = vadd.f32 %v364, %v432
      %v434 = vpop.f32.mrb[0].mxu0
      %435 = vmatprep.mubr.f32.mxu0 0.0
      %436 = vmatmul.mubr.f32.gmra.mrb[0].mxu0 %v328
      %v437 = vpop.f32.mrb[0].mxu0
      %v438 = vadd.f32 %v364, %v437
      %v439 = vpop.f32.mrb[0].mxu0
      %440 = vmatprep.mubr.f32.mxu0 0.0
      %441 = vmatmul.mubr.f32.gmra.mrb[0].mxu0 %v329
      %v442 = vpop.f32.mrb[0].mxu0
      %v443 = vadd.f32 %v364, %v442
      %v444 = vpop.f32.mrb[0].mxu0
      %445 = vmatprep.mubr.f32.mxu0 0.0
      %446 = vmatmul.mubr.f32.gmra.mrb[0].mxu0 %v330
      %v447 = vpop.f32.mrb[0].mxu0
      %v448 = vadd.f32 %v364, %v447
      %v449 = vpop.f32.mrb[0].mxu0
      %450 = vmatprep.mubr.f32.mxu0 0.0
      %451 = vmatmul.mubr.f32.gmra.mrb[0].mxu0 %v331
      %v452 = vpop.f32.mrb[0].mxu0
      %v453 = vadd.f32 %v364, %v452
      %v454 = vpop.f32.mrb[0].mxu0
      %455 = vmatprep.mubr.f32.mxu0 0.0
      %456 = vmatmul.mubr.f32.gmra.mrb[0].mxu0 %v332
      %v457 = vpop.f32.mrb[0].mxu0
      %v458 = vadd.f32 %v364, %v457
      %v459 = vpop.f32.mrb[0].mxu0
      %460 = vmatprep.mubr.f32.mxu0 0.0
      %461 = vmatmul.mubr.f32.gmra.mrb[0].mxu0 %v333
      %v462 = vpop.f32.mrb[0].mxu0
      %v463 = vadd.f32 %v364, %v462
      %v464 = vpop.f32.mrb[0].mxu0
      %465 = vmatprep.mubr.f32.mxu0 0.0
      %466 = vmatmul.mubr.f32.gmra.mrb[0].mxu0 %v334
      %v467 = vpop.f32.mrb[0].mxu0
      %v468 = vadd.f32 %v364, %v467
      %v469 = vpop.f32.mrb[0].mxu0
      %470 = vmatprep.mubr.f32.mxu0 0.0
      %471 = vmatmul.mubr.f32.gmra.mrb[0].mxu0 %v335
      %v472 = vpop.f32.mrb[0].mxu0
      %v473 = vadd.f32 %v364, %v472
      %v474 = vpop.f32.mrb[0].mxu0
      %475 = vmatprep.mubr.f32.mxu0 0.0
      %476 = vmatmul.mubr.f32.gmra.mrb[0].mxu0 %v336
      %v477 = vpop.f32.mrb[0].mxu0
      %v478 = vadd.f32 %v364, %v477
      %v479 = vpop.f32.mrb[0].mxu0
      %480 = vmatprep.mubr.f32.mxu0 0.0
      %481 = vmatmul.mubr.f32.gmra.mrb[0].mxu0 %v337
      %v482 = vpop.f32.mrb[0].mxu0
      %v483 = vadd.f32 %v364, %v482
      %v484 = vpop.f32.mrb[0].mxu0
      %485 = vmatprep.mubr.f32.mxu0 0.0
      %486 = vmatmul.mubr.f32.gmra.mrb[0].mxu0 %v338
      %v487 = vpop.f32.mrb[0].mxu0
      %v488 = vadd.f32 %v364, %v487
      %v489 = vpop.f32.mrb[0].mxu0
      %490 = vmatprep.mubr.f32.mxu0 0.0
      %491 = vmatmul.mubr.f32.gmra.mrb[0].mxu0 %v339
      %v492 = vpop.f32.mrb[0].mxu0
      %v493 = vadd.f32 %v364, %v492
      %v494 = vpop.f32.mrb[0].mxu0
      %495 = vmatprep.mubr.f32.mxu0 0.0
      %496 = vmatmul.mubr.f32.gmra.mrb[0].mxu0 %v340
      %v497 = vpop.f32.mrb[0].mxu0
      %v498 = vadd.f32 %v364, %v497
      %v499 = vpop.f32.mrb[0].mxu0
      %500 = vmatprep.mubr.f32.mxu0 0.0
      %501 = vmatmul.mubr.f32.gmra.mrb[0].mxu0 %v341
      %v502 = vpop.f32.mrb[0].mxu0
      %v503 = vadd.f32 %v364, %v502
      %v504 = vpop.f32.mrb[0].mxu0
      %505 = vmatprep.mubr.f32.mxu0 0.0
      %506 = vmatmul.mubr.f32.gmra.mrb[0].mxu0 %v342
      %v507 = vpop.f32.mrb[0].mxu0
      %v508 = vadd.f32 %v364, %v507
      %v509 = vpop.f32.mrb[0].mxu0
      %510 = vdwg.mxu0
      %v511 = vmax.f32 %v433, 0.0
      %v512 = vmax.f32 %v438, 0.0
      %v513 = vmax.f32 %v443, 0.0
      %v514 = vmax.f32 %v448, 0.0
      %v515 = vmax.f32 %v453, 0.0
      %v516 = vmax.f32 %v458, 0.0
      %v517 = vmax.f32 %v463, 0.0
      %v518 = vmax.f32 %v468, 0.0
      %v519 = vmax.f32 %v473, 0.0
      %v520 = vmax.f32 %v478, 0.0
      %v521 = vmax.f32 %v483, 0.0
      %v522 = vmax.f32 %v488, 0.0
      %v523 = vmax.f32 %v493, 0.0
      %v524 = vmax.f32 %v498, 0.0
      %v525 = vmax.f32 %v503, 0.0
      %v526 = vmax.f32 %v508, 0.0
      %v527 = vld [vmem:[#allocation9] sm:$0xff]
      %v528 = vld [vmem:[#allocation9 + $0x8] sm:$0xff]
      %v529 = vld [vmem:[#allocation9 + $0x10] sm:$0xff]
      %v530 = vld [vmem:[#allocation9 + $0x18] sm:$0xff]
      %v531 = vld [vmem:[#allocation9 + $0x20] sm:$0xff]
      %v532 = vld [vmem:[#allocation9 + $0x28] sm:$0xff]
      %v533 = vld [vmem:[#allocation9 + $0x30] sm:$0xff]
      %v534 = vld [vmem:[#allocation9 + $0x38] sm:$0xff]
      %v535 = vld [vmem:[#allocation9 + $0x40] sm:$0xff]
      %v536 = vld [vmem:[#allocation9 + $0x48] sm:$0xff]
      %v537 = vld [vmem:[#allocation9 + $0x50] sm:$0xff]
      %v538 = vld [vmem:[#allocation9 + $0x58] sm:$0xff]
      %v539 = vld [vmem:[#allocation9 + $0x60] sm:$0xff]
      %v540 = vld [vmem:[#allocation9 + $0x68] sm:$0xff]
      %v541 = vld [vmem:[#allocation9 + $0x70] sm:$0xff]
      %v542 = vld [vmem:[#allocation9 + $0x78] sm:$0xff]
      %v543 = vld [vmem:[%s5] sm:$0x1]
      %v545 = vlaneseq
      %v546 = vshrl.u32 %v545, 7
      %v547 = vsub.s32 0, %v546
      %v548 = vrot.slane %v543, %v547
      %550 = vmatprep.subr.mxu0 0.0
      %551 = vmatpush1.msra.mxu0 %v527
      %552 = vmatprep.subr.mxu0 0.0
      %553 = vmatpush1.msra.mxu0 %v528
      %554 = vmatprep.subr.mxu0 0.0
      %555 = vmatpush1.msra.mxu0 %v529
      %556 = vmatprep.subr.mxu0 0.0
      %557 = vmatpush1.msra.mxu0 %v530
      %558 = vmatprep.subr.mxu0 0.0
      %559 = vmatpush1.msra.mxu0 %v531
      %560 = vmatprep.subr.mxu0 0.0
      %561 = vmatpush1.msra.mxu0 %v532
      %562 = vmatprep.subr.mxu0 0.0
      %563 = vmatpush1.msra.mxu0 %v533
      %564 = vmatprep.subr.mxu0 0.0
      %565 = vmatpush1.msra.mxu0 %v534
      %566 = vmatprep.subr.mxu0 0.0
      %567 = vmatpush1.msra.mxu0 %v535
      %568 = vmatprep.subr.mxu0 0.0
      %569 = vmatpush1.msra.mxu0 %v536
      %570 = vmatprep.subr.mxu0 0.0
      %571 = vmatpush1.msra.mxu0 %v537
      %572 = vmatprep.subr.mxu0 0.0
      %573 = vmatpush1.msra.mxu0 %v538
      %574 = vmatprep.subr.mxu0 0.0
      %575 = vmatpush1.msra.mxu0 %v539
      %576 = vmatprep.subr.mxu0 0.0
      %577 = vmatpush1.msra.mxu0 %v540
      %578 = vmatprep.subr.mxu0 0.0
      %579 = vmatpush1.msra.mxu0 %v541
      %580 = vmatprep.subr.mxu0 0.0
      %581 = vmatpush1.msra.mxu0 %v542
      %582 = vmatprep.subr.mxu0 0.0
      %583 = vmatpush1.msra.mxu0 0.0
      %584 = vmatprep.subr.mxu0 0.0
      %585 = vmatpush1.msra.mxu0 0.0
      %586 = vmatprep.subr.mxu0 0.0
      %587 = vmatpush1.msra.mxu0 0.0
      %588 = vmatprep.subr.mxu0 0.0
      %589 = vmatpush1.msra.mxu0 0.0
      %590 = vmatprep.subr.mxu0 0.0
      %591 = vmatpush1.msra.mxu0 0.0
      %592 = vmatprep.subr.mxu0 0.0
      %593 = vmatpush1.msra.mxu0 0.0
      %594 = vmatprep.subr.mxu0 0.0
      %595 = vmatpush1.msra.mxu0 0.0
      %596 = vmatprep.subr.mxu0 0.0
      %597 = vmatpush1.msra.mxu0 0.0
      %598 = vmatprep.subr.mxu0 0.0
      %599 = vmatpush1.msra.mxu0 0.0
      %600 = vmatprep.subr.mxu0 0.0
      %601 = vmatpush1.msra.mxu0 0.0
      %602 = vmatprep.subr.mxu0 0.0
      %603 = vmatpush1.msra.mxu0 0.0
      %604 = vmatprep.subr.mxu0 0.0
      %605 = vmatpush1.msra.mxu0 0.0
      %606 = vmatprep.subr.mxu0 0.0
      %607 = vmatpush1.msra.mxu0 0.0
      %608 = vmatprep.subr.mxu0 0.0
      %609 = vmatpush1.msra.mxu0 0.0
      %610 = vmatprep.subr.mxu0 0.0
      %611 = vmatpush1.msra.mxu0 0.0
      %612 = vmatprep.subr.mxu0 0.0
      %613 = vmatpush1.msra.mxu0 0.0
      %614 = vmatprep.mubr.f32.mxu0 0.0
      %615 = vmatmul.mubr.f32.gmra.mrb[0].mxu0 %v511
      %v616 = vpop.f32.mrb[0].mxu0
      %v617 = vadd.f32 %v548, %v616
      %v618 = vpop.f32.mrb[0].mxu0
      %619 = vmatprep.mubr.f32.mxu0 0.0
      %620 = vmatmul.mubr.f32.gmra.mrb[0].mxu0 %v512
      %v621 = vpop.f32.mrb[0].mxu0
      %v622 = vadd.f32 %v548, %v621
      %v623 = vpop.f32.mrb[0].mxu0
      %624 = vmatprep.mubr.f32.mxu0 0.0
      %625 = vmatmul.mubr.f32.gmra.mrb[0].mxu0 %v513
      %v626 = vpop.f32.mrb[0].mxu0
      %v627 = vadd.f32 %v548, %v626
      %v628 = vpop.f32.mrb[0].mxu0
      %629 = vmatprep.mubr.f32.mxu0 0.0
      %630 = vmatmul.mubr.f32.gmra.mrb[0].mxu0 %v514
      %v631 = vpop.f32.mrb[0].mxu0
      %v632 = vadd.f32 %v548, %v631
      %v633 = vpop.f32.mrb[0].mxu0
      %634 = vmatprep.mubr.f32.mxu0 0.0
      %635 = vmatmul.mubr.f32.gmra.mrb[0].mxu0 %v515
      %v636 = vpop.f32.mrb[0].mxu0
      %v637 = vadd.f32 %v548, %v636
      %v638 = vpop.f32.mrb[0].mxu0
      %639 = vmatprep.mubr.f32.mxu0 0.0
      %640 = vmatmul.mubr.f32.gmra.mrb[0].mxu0 %v516
      %v641 = vpop.f32.mrb[0].mxu0
      %v642 = vadd.f32 %v548, %v641
      %v643 = vpop.f32.mrb[0].mxu0
      %644 = vmatprep.mubr.f32.mxu0 0.0
      %645 = vmatmul.mubr.f32.gmra.mrb[0].mxu0 %v517
      %v646 = vpop.f32.mrb[0].mxu0
      %v647 = vadd.f32 %v548, %v646
      %v648 = vpop.f32.mrb[0].mxu0
      %649 = vmatprep.mubr.f32.mxu0 0.0
      %650 = vmatmul.mubr.f32.gmra.mrb[0].mxu0 %v518
      %v651 = vpop.f32.mrb[0].mxu0
      %v652 = vadd.f32 %v548, %v651
      %v653 = vpop.f32.mrb[0].mxu0
      %654 = vmatprep.mubr.f32.mxu0 0.0
      %655 = vmatmul.mubr.f32.gmra.mrb[0].mxu0 %v519
      %v656 = vpop.f32.mrb[0].mxu0
      %v657 = vadd.f32 %v548, %v656
      %v658 = vpop.f32.mrb[0].mxu0
      %659 = vmatprep.mubr.f32.mxu0 0.0
      %660 = vmatmul.mubr.f32.gmra.mrb[0].mxu0 %v520
      %v661 = vpop.f32.mrb[0].mxu0
      %v662 = vadd.f32 %v548, %v661
      %v663 = vpop.f32.mrb[0].mxu0
      %664 = vmatprep.mubr.f32.mxu0 0.0
      %665 = vmatmul.mubr.f32.gmra.mrb[0].mxu0 %v521
      %v666 = vpop.f32.mrb[0].mxu0
      %v667 = vadd.f32 %v548, %v666
      %v668 = vpop.f32.mrb[0].mxu0
      %669 = vmatprep.mubr.f32.mxu0 0.0
      %670 = vmatmul.mubr.f32.gmra.mrb[0].mxu0 %v522
      %v671 = vpop.f32.mrb[0].mxu0
      %v672 = vadd.f32 %v548, %v671
      %v673 = vpop.f32.mrb[0].mxu0
      %674 = vmatprep.mubr.f32.mxu0 0.0
      %675 = vmatmul.mubr.f32.gmra.mrb[0].mxu0 %v523
      %v676 = vpop.f32.mrb[0].mxu0
      %v677 = vadd.f32 %v548, %v676
      %v678 = vpop.f32.mrb[0].mxu0
      %679 = vmatprep.mubr.f32.mxu0 0.0
      %680 = vmatmul.mubr.f32.gmra.mrb[0].mxu0 %v524
      %v681 = vpop.f32.mrb[0].mxu0
      %v682 = vadd.f32 %v548, %v681
      %v683 = vpop.f32.mrb[0].mxu0
      %684 = vmatprep.mubr.f32.mxu0 0.0
      %685 = vmatmul.mubr.f32.gmra.mrb[0].mxu0 %v525
      %v686 = vpop.f32.mrb[0].mxu0
      %v687 = vadd.f32 %v548, %v686
      %v688 = vpop.f32.mrb[0].mxu0
      %689 = vmatprep.mubr.f32.mxu0 0.0
      %690 = vmatmul.mubr.f32.gmra.mrb[0].mxu0 %v526
      %v691 = vpop.f32.mrb[0].mxu0
      %v692 = vadd.f32 %v548, %v691
      %v693 = vpop.f32.mrb[0].mxu0
      %694 = vdwg.mxu0
      %695 = vst [vmem:[#allocation11] sm:$0xff] %v617
      %696 = vst [vmem:[#allocation11 + $0x8] sm:$0xff] %v622
      %697 = vst [vmem:[#allocation11 + $0x10] sm:$0xff] %v627
      %698 = vst [vmem:[#allocation11 + $0x18] sm:$0xff] %v632
      %699 = vst [vmem:[#allocation11 + $0x20] sm:$0xff] %v637
      %700 = vst [vmem:[#allocation11 + $0x28] sm:$0xff] %v642
      %701 = vst [vmem:[#allocation11 + $0x30] sm:$0xff] %v647
      %702 = vst [vmem:[#allocation11 + $0x38] sm:$0xff] %v652
      %703 = vst [vmem:[#allocation11 + $0x40] sm:$0xff] %v657
      %704 = vst [vmem:[#allocation11 + $0x48] sm:$0xff] %v662
      %705 = vst [vmem:[#allocation11 + $0x50] sm:$0xff] %v667
      %706 = vst [vmem:[#allocation11 + $0x58] sm:$0xff] %v672
      %707 = vst [vmem:[#allocation11 + $0x60] sm:$0xff] %v677
      %708 = vst [vmem:[#allocation11 + $0x68] sm:$0xff] %v682
      %709 = vst [vmem:[#allocation11 + $0x70] sm:$0xff] %v687
      %710 = vst [vmem:[#allocation11 + $0x78] sm:$0xff] %v692
    $region49: #{tpu_custom_call.1} parent=1 // pred_fallthru
      _
    // Predicated region
    $region50: #{tpu_custom_call.1} parent=1 // pred_check
      _
    $region51: #{tpu_custom_call.1} parent=1 // pred_check_branch
      %712 = sbr.rel (0) target = $region53
    $region52: #{tpu_custom_call.1} parent=1 // pred_region
      %s714 = ssub.s32 2048, 2048
      %715 = vsyncadd [#allocation5], %s714
      %s716 = sshll.u32 [#allocation11], 4
      %s717 = int_to_ptr.vmem [resolvable:$true] %s716
      %722 = dma.vmem_to_hbm [thread:$0]  %s717, 2048, %s6, [#allocation5], 128, 128, 8
    $region53: #{tpu_custom_call.1} parent=1 // pred_fallthru
      _
    // Predicated region
    $region54: #{tpu_custom_call.1} parent=1 // pred_check
      _
    $region55: #{tpu_custom_call.1} parent=1 // pred_check_branch
      %724 = sbr.rel (0) target = $region57
    $region56: #{tpu_custom_call.1} parent=1 // pred_region
      %725 = dma.done [#allocation5], 2048
    $region57: #{tpu_custom_call.1} parent=1 // pred_fallthru
      _
    %726 = vsyncpa [#allocation4], 1
    %727 = vsyncpa [#allocation7], 1
    %728 = vsyncpa [#allocation10], 1
    %729 = vsyncpa [#allocation5], 1

</llo_original>
